<compile_context>
chip_gen: v7x
topology: tpu7x:2x2x1
jax: 0.10.0
libtpu: 0.0.40
codegen_flags: <defaults>
</compile_context>

<pallas_src>
import jax
import jax.numpy as jnp
from jax.experimental import pallas as pl
from jax.experimental.pallas import tpu as pltpu


def _round_up(x, m):
    return ((x + m - 1) // m) * m


def _vmem_limit_bytes():
    """Generation-aware VMEM limit with headroom (v7x: 48 MiB, v5e/v6e: 96 MiB)."""
    cap = None
    try:
        cap = getattr(pltpu.get_tpu_info(), "vmem_capacity_bytes", None)
    except Exception:
        cap = None
    if not cap:
        cap = 64 * 1024 * 1024  # conservative: v7x per-TensorCore physical VMEM
    return int(min(0.75 * cap, cap - 16 * 1024 * 1024))


def _template_kernel(x_ref, x2_ref, rhs_q_ref, rhs_l_ref, bias_ref,
                     out_ref, acc_ref):
    k = pl.program_id(2)

    @pl.when(k == 0)
    def _():
        acc_ref[...] = jnp.zeros_like(acc_ref)

    # Two MXU calls on separate refs — no in-kernel concatenate / VMEM temp.
    #   acc += (x*x) @ (-0.5/sd^2)^T + x @ (mu/sd^2)^T
    acc_ref[...] += (
        jnp.dot(x2_ref[...], rhs_q_ref[...], preferred_element_type=jnp.float32)
        + jnp.dot(x_ref[...], rhs_l_ref[...], preferred_element_type=jnp.float32)
    )

    @pl.when(k == pl.num_programs(2) - 1)
    def _():
        out_ref[...] = (acc_ref[...] + bias_ref[...]).astype(out_ref.dtype)


def template_scores(text, class_center, class_std, *,
                    tile_b=512, tile_c=None, tile_k=2048,
                    compute_dtype=jnp.float32):
    """scores[b, c] = -0.5 * sum_d ((text[b,d]-mu[c,d]) / sd[c,d])**2"""
    B, D = text.shape
    C, _ = class_center.shape
    f32 = jnp.float32
    itemsize = jnp.dtype(compute_dtype).itemsize

    x = text.astype(f32)
    mu = class_center.astype(f32)
    sd = class_std.astype(f32)

    # --- K (feature) tiling: keep D whole if small, split for very large D
    #     (v7x 64 MiB VMEM safety).  tk is always a lane multiple.
    tk = min(_round_up(D, 128), _round_up(tile_k, 128))
    Kp = _round_up(D, tk)
    if Kp != D:
        # pads contribute exactly 0 to every score (mu=0, sd=1, x=0)
        x = jnp.pad(x, ((0, 0), (0, Kp - D)))
        mu = jnp.pad(mu, ((0, 0), (0, Kp - D)))
        sd = jnp.pad(sd, ((0, 0), (0, Kp - D)), constant_values=1.0)

    # --- batch-invariant class preprocessing + x^2, done ONCE in XLA.
    inv_var = 1.0 / (sd * sd)                         # [C, Kp]
    rhs_q = (-0.5 * inv_var).T                        # [Kp, C]  quadratic term
    rhs_l = (mu * inv_var).T                          # [Kp, C]  linear term
    bias = -0.5 * jnp.sum(mu * mu * inv_var, axis=-1)  # [C]
    x2 = x * x

    # --- cast MXU operands (f32 by default; bf16 gives 3-6x MXU + 1/2 HBM).
    x = x.astype(compute_dtype)
    x2 = x2.astype(compute_dtype)
    rhs_q = rhs_q.astype(compute_dtype)
    rhs_l = rhs_l.astype(compute_dtype)

    # --- tile sizes: 8-aligned batch rows, 128-aligned lane-dense class cols.
    Cp128 = _round_up(C, 128)
    if tile_c is None:
        # Collapse the class axis (grid-resident rhs, DMA'd once) when both
        # class matrices + double buffering fit comfortably in VMEM.
        class_bytes = 2 * 2 * tk * Cp128 * itemsize
        tc = Cp128 if class_bytes <= 16 * 1024 * 1024 else 256
    else:
        tc = _round_up(tile_c, 128)
    tc = min(tc, Cp128)

    tb = min(_round_up(tile_b, 8), _round_up(B, 8))
    # v7x (2 TCs): keep at least 2 parallel batch tiles when the class axis
    # collapsed, so both TensorCores get work.  No-op for tiny B or 1-TC chips.
    if tc == Cp128 and _round_up(B, 8) > 8 and _round_up(B, tb) // tb < 2:
        tb = _round_up((_round_up(B, 8) + 1) // 2, 8)

    Bp = _round_up(B, tb)
    Cp = _round_up(C, tc)

    x_p = jnp.pad(x, ((0, Bp - B), (0, 0)))
    x2_p = jnp.pad(x2, ((0, Bp - B), (0, 0)))
    rhs_q_p = jnp.pad(rhs_q, ((0, 0), (0, Cp - C)))
    rhs_l_p = jnp.pad(rhs_l, ((0, 0), (0, Cp - C)))
    bias_p = jnp.pad(bias, ((0, Cp - C),)).reshape(1, Cp).astype(f32)

    grid = (Bp // tb, Cp // tc, Kp // tk)

    cost = pl.CostEstimate(
        flops=int(2.0 * 2 * Bp * Kp * Cp),
        transcendentals=0,
        bytes_accessed=int((2 * Bp * Kp + 2 * Kp * Cp) * itemsize + Bp * Cp * 4),
    )

    out = pl.pallas_call(
        _template_kernel,
        out_shape=jax.ShapeDtypeStruct((Bp, Cp), f32),
        grid_spec=pltpu.PrefetchScalarGridSpec(
            num_scalar_prefetch=0,
            grid=grid,
            in_specs=[
                pl.BlockSpec((tb, tk), lambda i, j, k: (i, k)),   # x tile
                pl.BlockSpec((tb, tk), lambda i, j, k: (i, k)),   # x*x tile
                pl.BlockSpec((tk, tc), lambda i, j, k: (k, j)),   # -0.5/sd^2 ^T
                pl.BlockSpec((tk, tc), lambda i, j, k: (k, j)),   # mu/sd^2  ^T
                pl.BlockSpec((1, tc), lambda i, j, k: (0, j)),    # per-class bias
            ],
            out_specs=pl.BlockSpec((tb, tc), lambda i, j, k: (i, j)),
            scratch_shapes=[pltpu.VMEM((tb, tc), jnp.float32)],
        ),
        compiler_params=pltpu.CompilerParams(
            dimension_semantics=("parallel", "parallel", "arbitrary"),
            vmem_limit_bytes=_vmem_limit_bytes(),
        ),
        cost_estimate=cost,
    )(x_p, x2_p, rhs_q_p, rhs_l_p, bias_p)

    return out[:B, :C]


def _reference(text, class_center, class_std):
    z = (text[:, None, :] - class_center[None, :, :]) / class_std[None, :, :]
    return -0.5 * jnp.sum(z * z, axis=-1)


if __name__ == "__main__":
    key = jax.random.PRNGKey(0)
    k1, k2, k3 = jax.random.split(key, 3)

    # Case 1: small ragged shapes (C, D padded to 128 lanes), single-tile grid.
    B, C, D = 8, 12, 96
    text = jax.random.normal(k1, (B, D), dtype=jnp.float32)
    class_center = jax.random.normal(k2, (C, D), dtype=jnp.float32)
    class_std = 0.5 + jax.nn.softplus(
        jax.random.normal(k3, (C, D), dtype=jnp.float32))

    out = jax.block_until_ready(template_scores(text, class_center, class_std))
    ref = _reference(text, class_center, class_std)
    assert out.shape == (B, C), out.shape
    assert jnp.allclose(out, ref, atol=1e-2, rtol=1e-5), float(
        jnp.max(jnp.abs(out - ref)))

    # Case 2: force multi-tile B / C and the K-split accumulator path.
    B2, C2, D2 = 16, 200, 384
    k4, k5, k6 = jax.random.split(jax.random.PRNGKey(1), 3)
    text2 = jax.random.normal(k4, (B2, D2), dtype=jnp.float32)
    mu2 = jax.random.normal(k5, (C2, D2), dtype=jnp.float32)
    sd2 = 0.5 + jax.nn.softplus(jax.random.normal(k6, (C2, D2), dtype=jnp.float32))

    out2 = jax.block_until_ready(
        template_scores(text2, mu2, sd2, tile_b=8, tile_c=128, tile_k=128))
    ref2 = _reference(text2, mu2, sd2)
    assert out2.shape == (B2, C2), out2.shape
    assert jnp.allclose(out2, ref2, atol=1e-2, rtol=1e-5), float(
        jnp.max(jnp.abs(out2 - ref2)))

    # Case 3: optional bf16 MXU path (looser tolerance; f32 accumulation).
    out3 = jax.block_until_ready(
        template_scores(text, class_center, class_std,
                        compute_dtype=jnp.bfloat16))
    assert jnp.allclose(out3, ref, atol=0.5, rtol=3e-2), float(
        jnp.max(jnp.abs(out3 - ref)))

    print("KERNEL_OK")
</pallas_src>

<mosaic_0001>
module attributes {stable_mosaic.version = 11 : i64} {
  func.func @_template_kernel(%arg0: i32, %arg1: i32, %arg2: i32, %arg3: memref<8x128xf32, #tpu.memory_space<vmem>>, %arg4: memref<8x128xf32, #tpu.memory_space<vmem>>, %arg5: memref<128x128xf32, #tpu.memory_space<vmem>>, %arg6: memref<128x128xf32, #tpu.memory_space<vmem>>, %arg7: memref<1x128xf32, #tpu.memory_space<vmem>>, %arg8: memref<8x128xf32, #tpu.memory_space<vmem>>, %arg9: memref<8x128xf32, #tpu.memory_space<vmem>>) attributes {dimension_semantics = [#tpu.dimension_semantics<parallel>, #tpu.dimension_semantics<parallel>, #tpu.dimension_semantics<arbitrary>], iteration_bounds = array<i64: 1, 1, 1>, scalar_prefetch = 0 : i64, scratch_operands = 1 : i64, tpu.core_type = #tpu.core_type<tc>, window_params = [{transform_indices = @transform_0, window_bounds = array<i64: 8, 128>}, {transform_indices = @transform_1, window_bounds = array<i64: 8, 128>}, {transform_indices = @transform_2, window_bounds = array<i64: 128, 128>}, {transform_indices = @transform_3, window_bounds = array<i64: 128, 128>}, {transform_indices = @transform_4, window_bounds = array<i64: 1, 128>}, {transform_indices = @transform_5, window_bounds = array<i64: 8, 128>}]} {
    %c0_i32 = arith.constant 0 : i32
    %0 = arith.cmpi eq, %arg2, %c0_i32 : i32
    %1 = arith.extui %0 : i1 to i32
    %c0_i32_0 = arith.constant 0 : i32
    %2 = arith.cmpi ne, %1, %c0_i32_0 : i32
    scf.if %2 {
      %cst_15 = arith.constant 0.000000e+00 : f32
      %16 = vector.broadcast %cst_15 : f32 to vector<8x128xf32>
      %c0_16 = arith.constant 0 : index
      %c0_17 = arith.constant 0 : index
      %17 = vector.load %arg9[%c0_16, %c0_17] : memref<8x128xf32, #tpu.memory_space<vmem>>, vector<8x128xf32>
      tpu.vector_store %arg9[%c0_16, %c0_17], %16 {strides = array<i32>} : memref<8x128xf32, #tpu.memory_space<vmem>>, vector<8x128xf32>,
    } else {
    }
    %c0 = arith.constant 0 : index
    %c0_1 = arith.constant 0 : index
    %3 = vector.load %arg9[%c0, %c0_1] : memref<8x128xf32, #tpu.memory_space<vmem>>, vector<8x128xf32>
    %c0_2 = arith.constant 0 : index
    %c0_3 = arith.constant 0 : index
    %4 = vector.load %arg4[%c0_2, %c0_3] : memref<8x128xf32, #tpu.memory_space<vmem>>, vector<8x128xf32>
    %c0_4 = arith.constant 0 : index
    %c0_5 = arith.constant 0 : index
    %5 = vector.load %arg5[%c0_4, %c0_5] : memref<128x128xf32, #tpu.memory_space<vmem>>, vector<128x128xf32>
    %cst = arith.constant dense<0.000000e+00> : vector<8x128xf32>
    %6 = tpu.matmul %4, %5, %cst {dimension_numbers = #tpu.dot_dimension_numbers<[1], [0], [0], [1], [0, 0, 1, 1], [], []>} : vector<8x128xf32>, vector<128x128xf32>, vector<8x128xf32> -> vector<8x128xf32>
    %c0_6 = arith.constant 0 : index
    %c0_7 = arith.constant 0 : index
    %7 = vector.load %arg3[%c0_6, %c0_7] : memref<8x128xf32, #tpu.memory_space<vmem>>, vector<8x128xf32>
    %c0_8 = arith.constant 0 : index
    %c0_9 = arith.constant 0 : index
    %8 = vector.load %arg6[%c0_8, %c0_9] : memref<128x128xf32, #tpu.memory_space<vmem>>, vector<128x128xf32>
    %cst_10 = arith.constant dense<0.000000e+00> : vector<8x128xf32>
    %9 = tpu.matmul %7, %8, %cst_10 {dimension_numbers = #tpu.dot_dimension_numbers<[1], [0], [0], [1], [0, 0, 1, 1], [], []>} : vector<8x128xf32>, vector<128x128xf32>, vector<8x128xf32> -> vector<8x128xf32>
    %10 = arith.addf %6, %9 : vector<8x128xf32>
    %11 = arith.addf %3, %10 : vector<8x128xf32>
    %c0_11 = arith.constant 0 : index
    %c0_12 = arith.constant 0 : index
    %12 = vector.load %arg9[%c0_11, %c0_12] : memref<8x128xf32, #tpu.memory_space<vmem>>, vector<8x128xf32>
    tpu.vector_store %arg9[%c0_11, %c0_12], %11 {strides = array<i32>} : memref<8x128xf32, #tpu.memory_space<vmem>>, vector<8x128xf32>,
    %c0_i32_13 = arith.constant 0 : i32
    %13 = arith.cmpi eq, %arg2, %c0_i32_13 : i32
    %14 = arith.extui %13 : i1 to i32
    %c0_i32_14 = arith.constant 0 : i32
    %15 = arith.cmpi ne, %14, %c0_i32_14 : i32
    scf.if %15 {
      %c0_15 = arith.constant 0 : index
      %c0_16 = arith.constant 0 : index
      %16 = vector.load %arg9[%c0_15, %c0_16] : memref<8x128xf32, #tpu.memory_space<vmem>>, vector<8x128xf32>
      %c0_17 = arith.constant 0 : index
      %c0_18 = arith.constant 0 : index
      %17 = vector.load %arg7[%c0_17, %c0_18] : memref<1x128xf32, #tpu.memory_space<vmem>>, vector<1x128xf32>
      %18 = vector.broadcast %17 : vector<1x128xf32> to vector<8x128xf32>
      %19 = arith.addf %16, %18 : vector<8x128xf32>
      %c0_19 = arith.constant 0 : index
      %c0_20 = arith.constant 0 : index
      %20 = vector.load %arg8[%c0_19, %c0_20] : memref<8x128xf32, #tpu.memory_space<vmem>>, vector<8x128xf32>
      tpu.vector_store %arg8[%c0_19, %c0_20], %19 {strides = array<i32>} : memref<8x128xf32, #tpu.memory_space<vmem>>, vector<8x128xf32>,
    } else {
    }
    return
  }
  func.func @transform_0(%arg0: i32, %arg1: i32, %arg2: i32) -> (i32, i32) {
    %c0_i32 = arith.constant 0 : i32
    return %arg0, %arg2 : i32, i32
  }
  func.func @transform_1(%arg0: i32, %arg1: i32, %arg2: i32) -> (i32, i32) {
    %c0_i32 = arith.constant 0 : i32
    return %arg0, %arg2 : i32, i32
  }
  func.func @transform_2(%arg0: i32, %arg1: i32, %arg2: i32) -> (i32, i32) {
    %c0_i32 = arith.constant 0 : i32
    return %arg2, %arg1 : i32, i32
  }
  func.func @transform_3(%arg0: i32, %arg1: i32, %arg2: i32) -> (i32, i32) {
    %c0_i32 = arith.constant 0 : i32
    return %arg2, %arg1 : i32, i32
  }
  func.func @transform_4(%arg0: i32, %arg1: i32, %arg2: i32) -> (i32, i32) {
    %c0_i32 = arith.constant 0 : i32
    %c0_i32_0 = arith.constant 0 : i32
    return %c0_i32, %arg1 : i32, i32
  }
  func.func @transform_5(%arg0: i32, %arg1: i32, %arg2: i32) -> (i32, i32) {
    %c0_i32 = arith.constant 0 : i32
    return %arg0, %arg1 : i32, i32
  }
}

</mosaic_0001>

<llo_original>
// kernel: tpu_custom_call.1
$region0: #{tpu_custom_call.1}
  #allocation0 [shape = 'u32[]', space=smem, size = 0x4, offset = 0x4, fixed_abs, tag = 'smem constant byte address 0x4 - core index']
  #allocation1 [shape = 'u32[144,128]{1,0:T(1,128)}', space=vmem, size = 0x12000, scoped, tag = 'internal scratch']
  #allocation2 [shape = 'f32[8,128]{1,0:T(8,128)}', space=vmem, size = 0x1000, scoped, tag = 'scratch operand']
  %s0 = inlined_call_operand.hbm [shape: f32[8,128], index: 0, kind: input, shape index: {}]
  %s1 = inlined_call_operand.hbm [shape: f32[8,128], index: 1, kind: input, shape index: {}]
  %s2 = inlined_call_operand.hbm [shape: f32[128,128], index: 2, kind: input, shape index: {}]
  %s3 = inlined_call_operand.hbm [shape: f32[128,128], index: 3, kind: input, shape index: {}]
  %s4 = inlined_call_operand.vmem [shape: f32[1,128], index: 4, kind: input, shape index: {}]
  %s5 = inlined_call_operand.hbm [shape: f32[8,128], index: 5, kind: output, shape index: {}]
  %s6 = sld [smem:[#allocation0]]
  $region54: #{tpu_custom_call.1} parent=0
    _
  %s8 = ssub.s32 1, %s6
  %s9 = scalar_select 0, %s8, %s6
  $region1: #{tpu_custom_call.1} parent=0
    #allocation3 [shape = 'u8[4096]{0}', space=vmem, size = 0x1000, scoped, tag = 'input window, operand 0, single buffered']
    #allocation4 [shape = 's32[1]{0}', space=sflag, size = 0x4, scoped, tag = 'scoped memory for tpu_custom_call.1']
    #allocation5 [shape = 's32[1]{0}', space=sflag, size = 0x4, scoped, tag = 'scoped memory for tpu_custom_call.1']
    #allocation6 [shape = 'u8[4096]{0}', space=vmem, size = 0x1000, scoped, tag = 'input window, operand 1, single buffered']
    #allocation7 [shape = 's32[1]{0}', space=sflag, size = 0x4, scoped, tag = 'scoped memory for tpu_custom_call.1']
    #allocation8 [shape = 'u8[65536]{0}', space=vmem, size = 0x10000, scoped, tag = 'input window, operand 2, single buffered']
    #allocation9 [shape = 'u8[65536]{0}', space=vmem, size = 0x10000, scoped, tag = 'input window, operand 3, single buffered']
    #allocation10 [shape = 's32[1]{0}', space=sflag, size = 0x4, scoped, tag = 'scoped memory for tpu_custom_call.1']
    #allocation11 [shape = 'u8[4096]{0}', space=vmem, size = 0x1000, scoped, tag = 'output window, operand 0, single buffered']
    %10 = vsyncpa [#allocation4], 0
    %11 = vsyncpa [#allocation7], 0
    %12 = vsyncpa [#allocation10], 0
    %13 = vsyncpa [#allocation5], 0
    // Predicated region
    $region2: #{tpu_custom_call.1} parent=1 // pred_check
      _
    $region3: #{tpu_custom_call.1} parent=1 // pred_check_branch
      %15 = sbr.rel (0) target = $region5
    $region4: #{tpu_custom_call.1} parent=1 // pred_region
      %s17 = ssub.s32 128, 128
      %18 = vsyncadd [#allocation4], %s17
      %s20 = sshll.u32 [#allocation3], 4
      %s21 = int_to_ptr.vmem [resolvable:$true] %s20
      %23 = dma.hbm_to_vmem [thread:$0]  %s0, 128, %s21, [#allocation4]
    $region5: #{tpu_custom_call.1} parent=1 // pred_fallthru
      _
    // Predicated region
    $region6: #{tpu_custom_call.1} parent=1 // pred_check
      _
    $region7: #{tpu_custom_call.1} parent=1 // pred_check_branch
      %25 = sbr.rel (0) target = $region9
    $region8: #{tpu_custom_call.1} parent=1 // pred_region
      %s27 = ssub.s32 128, 128
      %28 = vsyncadd [#allocation7], %s27
      %s30 = sshll.u32 [#allocation6], 4
      %s31 = int_to_ptr.vmem [resolvable:$true] %s30
      %33 = dma.hbm_to_vmem [thread:$0]  %s1, 128, %s31, [#allocation7]
    $region9: #{tpu_custom_call.1} parent=1 // pred_fallthru
      _
    // Predicated region
    $region10: #{tpu_custom_call.1} parent=1 // pred_check
      _
    $region11: #{tpu_custom_call.1} parent=1 // pred_check_branch
      %35 = sbr.rel (0) target = $region13
    $region12: #{tpu_custom_call.1} parent=1 // pred_region
      %s37 = ssub.s32 2048, 2048
      %38 = vsyncadd [#allocation7], %s37
      %s39 = sshll.u32 [#allocation8], 4
      %s40 = int_to_ptr.vmem [resolvable:$true] %s39
      %45 = dma.hbm_to_vmem [thread:$0]  %s2, 2048, %s40, [#allocation7], 128, 128, 8
    $region13: #{tpu_custom_call.1} parent=1 // pred_fallthru
      _
    // Predicated region
    $region14: #{tpu_custom_call.1} parent=1 // pred_check
      _
    $region15: #{tpu_custom_call.1} parent=1 // pred_check_branch
      %47 = sbr.rel (0) target = $region17
    $region16: #{tpu_custom_call.1} parent=1 // pred_region
      %s49 = ssub.s32 2048, 2048
      %50 = vsyncadd [#allocation10], %s49
      %s51 = sshll.u32 [#allocation9], 4
      %s52 = int_to_ptr.vmem [resolvable:$true] %s51
      %57 = dma.hbm_to_vmem [thread:$0]  %s3, 2048, %s52, [#allocation10], 128, 128, 8
    $region17: #{tpu_custom_call.1} parent=1 // pred_fallthru
      _
    // Predicated region
    $region18: #{tpu_custom_call.1} parent=1 // pred_check
      _
    $region19: #{tpu_custom_call.1} parent=1 // pred_check_branch
      %59 = sbr.rel (0) target = $region21
    $region20: #{tpu_custom_call.1} parent=1 // pred_region
      _
    $region21: #{tpu_custom_call.1} parent=1 // pred_fallthru
      _
    // Predicated region
    $region22: #{tpu_custom_call.1} parent=1 // pred_check
      _
    $region23: #{tpu_custom_call.1} parent=1 // pred_check_branch
      %61 = sbr.rel (0) target = $region25
    $region24: #{tpu_custom_call.1} parent=1 // pred_region
      %62 = dma.done [#allocation4], 128
    $region25: #{tpu_custom_call.1} parent=1 // pred_fallthru
      _
    // Predicated region
    $region26: #{tpu_custom_call.1} parent=1 // pred_check
      _
    $region27: #{tpu_custom_call.1} parent=1 // pred_check_branch
      %64 = sbr.rel (0) target = $region29
    $region28: #{tpu_custom_call.1} parent=1 // pred_region
      %65 = dma.done [#allocation7], 128
    $region29: #{tpu_custom_call.1} parent=1 // pred_fallthru
      _
    // Predicated region
    $region30: #{tpu_custom_call.1} parent=1 // pred_check
      _
    $region31: #{tpu_custom_call.1} parent=1 // pred_check_branch
      %67 = sbr.rel (0) target = $region33
    $region32: #{tpu_custom_call.1} parent=1 // pred_region
      %68 = dma.done [#allocation7], 2048
    $region33: #{tpu_custom_call.1} parent=1 // pred_fallthru
      _
    // Predicated region
    $region34: #{tpu_custom_call.1} parent=1 // pred_check
      _
    $region35: #{tpu_custom_call.1} parent=1 // pred_check_branch
      %70 = sbr.rel (0) target = $region37
    $region36: #{tpu_custom_call.1} parent=1 // pred_region
      %71 = dma.done [#allocation10], 2048
    $region37: #{tpu_custom_call.1} parent=1 // pred_fallthru
      _
    %p72 = scmp.eq.s32.totalorder 0, 0
    // Predicated region
    $region38: #{tpu_custom_call.1} parent=1 // pred_check
      %p73 = pneg %p72
    $region39: #{tpu_custom_call.1} parent=1 // pred_check_branch
      %75 = sbr.rel (%p73) target = $region41
    $region40: #{tpu_custom_call.1} parent=1 // pred_region
      %76 = vst [vmem:[#allocation2] sm:$0xff] 0.0
    $region41: #{tpu_custom_call.1} parent=1 // pred_fallthru
      _
    %v77 = vld [vmem:[#allocation2] sm:$0xff]
    %v78 = vld [vmem:[#allocation6] sm:$0xff]
    %v79 = vld [vmem:[#allocation8] sm:$0xff]
    %v80 = vld [vmem:[#allocation8 + $0x8] sm:$0xff]
    %v81 = vld [vmem:[#allocation8 + $0x10] sm:$0xff]
    %v82 = vld [vmem:[#allocation8 + $0x18] sm:$0xff]
    %v83 = vld [vmem:[#allocation8 + $0x20] sm:$0xff]
    %v84 = vld [vmem:[#allocation8 + $0x28] sm:$0xff]
    %v85 = vld [vmem:[#allocation8 + $0x30] sm:$0xff]
    %v86 = vld [vmem:[#allocation8 + $0x38] sm:$0xff]
    %v87 = vld [vmem:[#allocation8 + $0x40] sm:$0xff]
    %v88 = vld [vmem:[#allocation8 + $0x48] sm:$0xff]
    %v89 = vld [vmem:[#allocation8 + $0x50] sm:$0xff]
    %v90 = vld [vmem:[#allocation8 + $0x58] sm:$0xff]
    %v91 = vld [vmem:[#allocation8 + $0x60] sm:$0xff]
    %v92 = vld [vmem:[#allocation8 + $0x68] sm:$0xff]
    %v93 = vld [vmem:[#allocation8 + $0x70] sm:$0xff]
    %v94 = vld [vmem:[#allocation8 + $0x78] sm:$0xff]
    %v95 = vld [vmem:[#allocation3] sm:$0xff]
    %v96 = vld [vmem:[#allocation9] sm:$0xff]
    %v97 = vld [vmem:[#allocation9 + $0x8] sm:$0xff]
    %v98 = vld [vmem:[#allocation9 + $0x10] sm:$0xff]
    %v99 = vld [vmem:[#allocation9 + $0x18] sm:$0xff]
    %v100 = vld [vmem:[#allocation9 + $0x20] sm:$0xff]
    %v101 = vld [vmem:[#allocation9 + $0x28] sm:$0xff]
    %v102 = vld [vmem:[#allocation9 + $0x30] sm:$0xff]
    %v103 = vld [vmem:[#allocation9 + $0x38] sm:$0xff]
    %v104 = vld [vmem:[#allocation9 + $0x40] sm:$0xff]
    %v105 = vld [vmem:[#allocation9 + $0x48] sm:$0xff]
    %v106 = vld [vmem:[#allocation9 + $0x50] sm:$0xff]
    %v107 = vld [vmem:[#allocation9 + $0x58] sm:$0xff]
    %v108 = vld [vmem:[#allocation9 + $0x60] sm:$0xff]
    %v109 = vld [vmem:[#allocation9 + $0x68] sm:$0xff]
    %v110 = vld [vmem:[#allocation9 + $0x70] sm:$0xff]
    %v111 = vld [vmem:[#allocation9 + $0x78] sm:$0xff]
    %112 = vmatprep.subr.mxu0 0.0
    %113 = vmatpush1.msra.mxu0 %v96
    %114 = vmatprep.subr.mxu0 0.0
    %115 = vmatpush1.msra.mxu0 %v97
    %116 = vmatprep.subr.mxu0 0.0
    %117 = vmatpush1.msra.mxu0 %v98
    %118 = vmatprep.subr.mxu0 0.0
    %119 = vmatpush1.msra.mxu0 %v99
    %120 = vmatprep.subr.mxu0 0.0
    %121 = vmatpush1.msra.mxu0 %v100
    %122 = vmatprep.subr.mxu0 0.0
    %123 = vmatpush1.msra.mxu0 %v101
    %124 = vmatprep.subr.mxu0 0.0
    %125 = vmatpush1.msra.mxu0 %v102
    %126 = vmatprep.subr.mxu0 0.0
    %127 = vmatpush1.msra.mxu0 %v103
    %128 = vmatprep.subr.mxu0 0.0
    %129 = vmatpush1.msra.mxu0 %v104
    %130 = vmatprep.subr.mxu0 0.0
    %131 = vmatpush1.msra.mxu0 %v105
    %132 = vmatprep.subr.mxu0 0.0
    %133 = vmatpush1.msra.mxu0 %v106
    %134 = vmatprep.subr.mxu0 0.0
    %135 = vmatpush1.msra.mxu0 %v107
    %136 = vmatprep.subr.mxu0 0.0
    %137 = vmatpush1.msra.mxu0 %v108
    %138 = vmatprep.subr.mxu0 0.0
    %139 = vmatpush1.msra.mxu0 %v109
    %140 = vmatprep.subr.mxu0 0.0
    %141 = vmatpush1.msra.mxu0 %v110
    %142 = vmatprep.subr.mxu0 0.0
    %143 = vmatpush1.msra.mxu0 %v111
    %144 = vmatprep.subr.mxu0 0.0
    %145 = vmatpush1.msra.mxu0 0.0
    %146 = vmatprep.subr.mxu0 0.0
    %147 = vmatpush1.msra.mxu0 0.0
    %148 = vmatprep.subr.mxu0 0.0
    %149 = vmatpush1.msra.mxu0 0.0
    %150 = vmatprep.subr.mxu0 0.0
    %151 = vmatpush1.msra.mxu0 0.0
    %152 = vmatprep.subr.mxu0 0.0
    %153 = vmatpush1.msra.mxu0 0.0
    %154 = vmatprep.subr.mxu0 0.0
    %155 = vmatpush1.msra.mxu0 0.0
    %156 = vmatprep.subr.mxu0 0.0
    %157 = vmatpush1.msra.mxu0 0.0
    %158 = vmatprep.subr.mxu0 0.0
    %159 = vmatpush1.msra.mxu0 0.0
    %160 = vmatprep.subr.mxu0 0.0
    %161 = vmatpush1.msra.mxu0 0.0
    %162 = vmatprep.subr.mxu0 0.0
    %163 = vmatpush1.msra.mxu0 0.0
    %164 = vmatprep.subr.mxu0 0.0
    %165 = vmatpush1.msra.mxu0 0.0
    %166 = vmatprep.subr.mxu0 0.0
    %167 = vmatpush1.msra.mxu0 0.0
    %168 = vmatprep.subr.mxu0 0.0
    %169 = vmatpush1.msra.mxu0 0.0
    %170 = vmatprep.subr.mxu0 0.0
    %171 = vmatpush1.msra.mxu0 0.0
    %172 = vmatprep.subr.mxu0 0.0
    %173 = vmatpush1.msra.mxu0 0.0
    %174 = vmatprep.subr.mxu0 0.0
    %175 = vmatpush1.msra.mxu0 0.0
    %176 = vmatprep.mubr.f32.mxu0 0.0
    %177 = vmatmul.mubr.f32.gmra.mrb[0].mxu0 %v95
    %v178 = vpop.f32.mrb[0].mxu0
    %v179 = vadd.f32 0.0, %v178
    %v180 = vpop.f32.mrb[0].mxu0
    %181 = vdwg.mxu0
    %182 = vmatprep.subr.mxu0 0.0
    %183 = vmatpush1.msra.mxu0 %v79
    %184 = vmatprep.subr.mxu0 0.0
    %185 = vmatpush1.msra.mxu0 %v80
    %186 = vmatprep.subr.mxu0 0.0
    %187 = vmatpush1.msra.mxu0 %v81
    %188 = vmatprep.subr.mxu0 0.0
    %189 = vmatpush1.msra.mxu0 %v82
    %190 = vmatprep.subr.mxu0 0.0
    %191 = vmatpush1.msra.mxu0 %v83
    %192 = vmatprep.subr.mxu0 0.0
    %193 = vmatpush1.msra.mxu0 %v84
    %194 = vmatprep.subr.mxu0 0.0
    %195 = vmatpush1.msra.mxu0 %v85
    %196 = vmatprep.subr.mxu0 0.0
    %197 = vmatpush1.msra.mxu0 %v86
    %198 = vmatprep.subr.mxu0 0.0
    %199 = vmatpush1.msra.mxu0 %v87
    %200 = vmatprep.subr.mxu0 0.0
    %201 = vmatpush1.msra.mxu0 %v88
    %202 = vmatprep.subr.mxu0 0.0
    %203 = vmatpush1.msra.mxu0 %v89
    %204 = vmatprep.subr.mxu0 0.0
    %205 = vmatpush1.msra.mxu0 %v90
    %206 = vmatprep.subr.mxu0 0.0
    %207 = vmatpush1.msra.mxu0 %v91
    %208 = vmatprep.subr.mxu0 0.0
    %209 = vmatpush1.msra.mxu0 %v92
    %210 = vmatprep.subr.mxu0 0.0
    %211 = vmatpush1.msra.mxu0 %v93
    %212 = vmatprep.subr.mxu0 0.0
    %213 = vmatpush1.msra.mxu0 %v94
    %214 = vmatprep.subr.mxu0 0.0
    %215 = vmatpush1.msra.mxu0 0.0
    %216 = vmatprep.subr.mxu0 0.0
    %217 = vmatpush1.msra.mxu0 0.0
    %218 = vmatprep.subr.mxu0 0.0
    %219 = vmatpush1.msra.mxu0 0.0
    %220 = vmatprep.subr.mxu0 0.0
    %221 = vmatpush1.msra.mxu0 0.0
    %222 = vmatprep.subr.mxu0 0.0
    %223 = vmatpush1.msra.mxu0 0.0
    %224 = vmatprep.subr.mxu0 0.0
    %225 = vmatpush1.msra.mxu0 0.0
    %226 = vmatprep.subr.mxu0 0.0
    %227 = vmatpush1.msra.mxu0 0.0
    %228 = vmatprep.subr.mxu0 0.0
    %229 = vmatpush1.msra.mxu0 0.0
    %230 = vmatprep.subr.mxu0 0.0
    %231 = vmatpush1.msra.mxu0 0.0
    %232 = vmatprep.subr.mxu0 0.0
    %233 = vmatpush1.msra.mxu0 0.0
    %234 = vmatprep.subr.mxu0 0.0
    %235 = vmatpush1.msra.mxu0 0.0
    %236 = vmatprep.subr.mxu0 0.0
    %237 = vmatpush1.msra.mxu0 0.0
    %238 = vmatprep.subr.mxu0 0.0
    %239 = vmatpush1.msra.mxu0 0.0
    %240 = vmatprep.subr.mxu0 0.0
    %241 = vmatpush1.msra.mxu0 0.0
    %242 = vmatprep.subr.mxu0 0.0
    %243 = vmatpush1.msra.mxu0 0.0
    %244 = vmatprep.subr.mxu0 0.0
    %245 = vmatpush1.msra.mxu0 0.0
    %246 = vmatprep.mubr.f32.mxu0 0.0
    %247 = vmatmul.mubr.f32.gmra.mrb[0].mxu0 %v78
    %v248 = vpop.f32.mrb[0].mxu0
    %v249 = vadd.f32 %v179, %v248
    %v250 = vpop.f32.mrb[0].mxu0
    %251 = vdwg.mxu0
    %v252 = vadd.f32 %v77, %v249
    %253 = vst [vmem:[#allocation2] sm:$0xff] %v252
    // Predicated region
    $region42: #{tpu_custom_call.1} parent=1 // pred_check
      %p254 = pneg %p72
    $region43: #{tpu_custom_call.1} parent=1 // pred_check_branch
      %256 = sbr.rel (%p254) target = $region45
    $region44: #{tpu_custom_call.1} parent=1 // pred_region
      %v257 = vld [vmem:[#allocation2] sm:$0xff]
      %v258 = vld [vmem:[%s4] sm:$0x1]
      %v260 = vlaneseq
      %v261 = vshrl.u32 %v260, 7
      %v262 = vsub.s32 0, %v261
      %v263 = vrot.slane %v258, %v262
      %v265 = vadd.f32 %v257, %v263
      %266 = vst [vmem:[#allocation11] sm:$0xff] %v265
    $region45: #{tpu_custom_call.1} parent=1 // pred_fallthru
      _
    // Predicated region
    $region46: #{tpu_custom_call.1} parent=1 // pred_check
      _
    $region47: #{tpu_custom_call.1} parent=1 // pred_check_branch
      %268 = sbr.rel (0) target = $region49
    $region48: #{tpu_custom_call.1} parent=1 // pred_region
      %s270 = ssub.s32 128, 128
      %271 = vsyncadd [#allocation5], %s270
      %s273 = sshll.u32 [#allocation11], 4
      %s274 = int_to_ptr.vmem [resolvable:$true] %s273
      %276 = dma.vmem_to_hbm [thread:$0]  %s274, 128, %s5, [#allocation5]
    $region49: #{tpu_custom_call.1} parent=1 // pred_fallthru
      _
    // Predicated region
    $region50: #{tpu_custom_call.1} parent=1 // pred_check
      _
    $region51: #{tpu_custom_call.1} parent=1 // pred_check_branch
      %278 = sbr.rel (0) target = $region53
    $region52: #{tpu_custom_call.1} parent=1 // pred_region
      %279 = dma.done [#allocation5], 128
    $region53: #{tpu_custom_call.1} parent=1 // pred_fallthru
      _
    %280 = vsyncpa [#allocation4], 1
    %281 = vsyncpa [#allocation7], 1
    %282 = vsyncpa [#allocation10], 1
    %283 = vsyncpa [#allocation5], 1

</llo_original>
